<compile_context>
chip_gen: v6e
topology: v6e:2x2x1
jax: 0.10.0
libtpu: 0.0.40
codegen_flags: <defaults>
</compile_context>

<pallas_src>
import jax
import jax.numpy as jnp
from jax.experimental import pallas as pl
from jax.experimental.pallas import tpu as pltpu

N_FEATURES = 2
N_OUT = 2
GL1_SIZE = 128
GL2_SIZE = 128
GL3_SIZE = 128
LEAKY_SLOPE = 0.01  # torch.nn.LeakyReLU default negative_slope


def _leaky_relu(x):
    return jnp.where(x > 0, x, LEAKY_SLOPE * x)


def _round_up(n, m):
    return ((n + m - 1) // m) * m


def generator_kernel(x_ref,            # (2, TB)
                     w0_ref, b0_ref,   # (128, 2), (128, 1)
                     w1_ref, b1_ref,   # (128, 128), (128, 1)
                     w2_ref, b2_ref,   # (128, 128), (128, 1)
                     w3_ref, b3_ref,   # (2, 128), (2, 1)
                     o_ref):           # (2, TB)
    x = x_ref[...]  # feature-major: (2, TB) f32

    # hidden0 + leaky_relu -- K=2 contraction on the VPU (outer-product broadcast FMAs);
    # x rows are stride-0 sublane broadcasts in this layout.
    h = (w0_ref[:, 0:1] * x[0:1, :]
         + w0_ref[:, 1:2] * x[1:2, :]
         + b0_ref[...])
    h = _leaky_relu(h)

    # hidden1 + leaky_relu: (128,128) @ (128,TB) -- N=TB fills the MXU columns.
    h = jnp.dot(w1_ref[...], h, preferred_element_type=jnp.float32) + b1_ref[...]
    h = _leaky_relu(h)

    # hidden2 + leaky_relu
    h = jnp.dot(w2_ref[...], h, preferred_element_type=jnp.float32) + b2_ref[...]
    h = _leaky_relu(h)

    # out: (2,128) @ (128,TB) -> (2,TB); M=2 is ~1 LHS push per N-tile, and the store
    # is lane-dense (last dim TB, multiple of 128 -> unmasked vst).
    y = jnp.dot(w3_ref[...], h, preferred_element_type=jnp.float32) + b3_ref[...]
    o_ref[...] = y.astype(o_ref.dtype)


def generator_forward(x, params, tb=4096):
    """x: (B, 2) float32. Returns (B, 2) float32."""
    (w0, b0, w1, b1, w2, b2, w3, b3) = params
    B = x.shape[0]

    # Batch tile: multiple of 128 (lane rule in the feature-major layout), capped at tb.
    TB = _round_up(min(tb, _round_up(B, 128)), 128)
    n_tiles = pl.cdiv(B, TB)
    B_pad = n_tiles * TB

    # Feature-major plumbing: transpose and (only if needed) pad along the batch axis.
    xT = x.T  # (2, B)
    if B_pad != B:
        xT = jnp.pad(xT, ((0, 0), (0, B_pad - B)))

    # Advisory cost for XLA scheduling.
    flops = 2 * B_pad * (N_FEATURES * GL1_SIZE
                         + GL1_SIZE * GL2_SIZE
                         + GL2_SIZE * GL3_SIZE
                         + GL3_SIZE * N_OUT)
    weight_bytes = 4 * (GL1_SIZE * N_FEATURES + GL1_SIZE
                        + GL2_SIZE * GL1_SIZE + GL2_SIZE
                        + GL3_SIZE * GL2_SIZE + GL3_SIZE
                        + N_OUT * GL3_SIZE + N_OUT)
    bytes_accessed = B_pad * (N_FEATURES + N_OUT) * 4 + weight_bytes

    # x / out march along the batch (lane) grid axis; weights & biases use constant
    # index_maps so they are DMA'd once and stay VMEM-resident across all grid steps.
    const = lambda i: (0, 0)
    in_specs = [
        pl.BlockSpec((N_FEATURES, TB), lambda i: (0, i)),       # xT
        pl.BlockSpec((GL1_SIZE, N_FEATURES), const),            # w0 (out,in)
        pl.BlockSpec((GL1_SIZE, 1), const),                     # b0
        pl.BlockSpec((GL2_SIZE, GL1_SIZE), const),              # w1
        pl.BlockSpec((GL2_SIZE, 1), const),                     # b1
        pl.BlockSpec((GL3_SIZE, GL2_SIZE), const),              # w2
        pl.BlockSpec((GL3_SIZE, 1), const),                     # b2
        pl.BlockSpec((N_OUT, GL3_SIZE), const),                 # w3
        pl.BlockSpec((N_OUT, 1), const),                        # b3
    ]
    out_spec = pl.BlockSpec((N_OUT, TB), lambda i: (0, i))

    outT = pl.pallas_call(
        generator_kernel,
        out_shape=jax.ShapeDtypeStruct((N_OUT, B_pad), jnp.float32),
        grid=(n_tiles,),
        in_specs=in_specs,
        out_specs=out_spec,
        compiler_params=pltpu.CompilerParams(
            dimension_semantics=("parallel",)),
        cost_estimate=pl.CostEstimate(
            flops=flops, transcendentals=0, bytes_accessed=bytes_accessed),
    )(xT, w0, b0, w1, b1, w2, b2, w3, b3)

    if B_pad != B:
        outT = outT[:, :B]
    return outT.T


def init_params(key):
    """nn.Linear weights ~ Normal(0, 0.02) (per nn.init.normal_ in __init__), stored in
    PyTorch's (out_features, in_features) layout (= what the feature-major kernel wants);
    biases ~ Uniform(-1/sqrt(fan_in), 1/sqrt(fan_in)) (PyTorch default), stored (out, 1)."""
    ks = jax.random.split(key, 8)
    dims = [(N_FEATURES, GL1_SIZE), (GL1_SIZE, GL2_SIZE),
            (GL2_SIZE, GL3_SIZE), (GL3_SIZE, N_OUT)]
    params = []
    for i, (fan_in, fan_out) in enumerate(dims):
        w = 0.02 * jax.random.normal(ks[2 * i], (fan_out, fan_in), jnp.float32)
        bound = 1.0 / jnp.sqrt(jnp.float32(fan_in))
        b = jax.random.uniform(ks[2 * i + 1], (fan_out, 1), jnp.float32,
                               minval=-bound, maxval=bound)
        params.extend([w, b])
    return tuple(params)


def reference_forward(x, params):
    (w0, b0, w1, b1, w2, b2, w3, b3) = params
    h = _leaky_relu(x @ w0.T + b0.T)
    h = _leaky_relu(h @ w1.T + b1.T)
    h = _leaky_relu(h @ w2.T + b2.T)
    return h @ w3.T + b3.T


if __name__ == "__main__":
    key = jax.random.PRNGKey(0)
    k_param, k_x, k_x2 = jax.random.split(key, 3)

    params = init_params(k_param)

    # Small batch (single grid step, batch padded up to one 128-lane tile).
    batch = 8
    x = jax.random.normal(k_x, (batch, N_FEATURES), jnp.float32)
    out = jax.block_until_ready(generator_forward(x, params))
    ref = reference_forward(x, params)
    assert out.shape == (batch, N_OUT)
    assert jnp.allclose(out, ref, atol=1e-5, rtol=1e-5)

    # Non-multiple-of-tile batch with a small tile: exercises padding + multi-step grid.
    batch2 = 300
    x2 = jax.random.normal(k_x2, (batch2, N_FEATURES), jnp.float32)
    out2 = jax.block_until_ready(generator_forward(x2, params, tb=128))
    ref2 = reference_forward(x2, params)
    assert out2.shape == (batch2, N_OUT)
    assert jnp.allclose(out2, ref2, atol=1e-5, rtol=1e-5)

    print("KERNEL_OK")
</pallas_src>

<mosaic_0001>
module attributes {stable_mosaic.version = 11 : i64} {
  func.func @generator_kernel(%arg0: i32, %arg1: memref<2x128xf32, #tpu.memory_space<vmem>>, %arg2: memref<128x2xf32, #tpu.memory_space<vmem>>, %arg3: memref<128x1xf32, #tpu.memory_space<vmem>>, %arg4: memref<128x128xf32, #tpu.memory_space<vmem>>, %arg5: memref<128x1xf32, #tpu.memory_space<vmem>>, %arg6: memref<128x128xf32, #tpu.memory_space<vmem>>, %arg7: memref<128x1xf32, #tpu.memory_space<vmem>>, %arg8: memref<2x128xf32, #tpu.memory_space<vmem>>, %arg9: memref<2x1xf32, #tpu.memory_space<vmem>>, %arg10: memref<2x128xf32, #tpu.memory_space<vmem>>) attributes {dimension_semantics = [#tpu.dimension_semantics<parallel>], iteration_bounds = array<i64: 1>, scalar_prefetch = 0 : i64, scratch_operands = 0 : i64, tpu.core_type = #tpu.core_type<tc>, window_params = [{transform_indices = @transform_0, window_bounds = array<i64: 2, 128>}, {pipeline_mode = #tpu.pipeline_mode<synchronous>, transform_indices = @transform_1, window_bounds = array<i64: 128, 2>}, {pipeline_mode = #tpu.pipeline_mode<synchronous>, transform_indices = @transform_2, window_bounds = array<i64: 128, 1>}, {pipeline_mode = #tpu.pipeline_mode<synchronous>, transform_indices = @transform_3, window_bounds = array<i64: 128, 128>}, {pipeline_mode = #tpu.pipeline_mode<synchronous>, transform_indices = @transform_4, window_bounds = array<i64: 128, 1>}, {pipeline_mode = #tpu.pipeline_mode<synchronous>, transform_indices = @transform_5, window_bounds = array<i64: 128, 128>}, {pipeline_mode = #tpu.pipeline_mode<synchronous>, transform_indices = @transform_6, window_bounds = array<i64: 128, 1>}, {pipeline_mode = #tpu.pipeline_mode<synchronous>, transform_indices = @transform_7, window_bounds = array<i64: 2, 128>}, {pipeline_mode = #tpu.pipeline_mode<synchronous>, transform_indices = @transform_8, window_bounds = array<i64: 2, 1>}, {transform_indices = @transform_9, window_bounds = array<i64: 2, 128>}]} {
    %c0 = arith.constant 0 : index
    %c0_0 = arith.constant 0 : index
    %0 = vector.load %arg1[%c0, %c0_0] : memref<2x128xf32, #tpu.memory_space<vmem>>, vector<2x128xf32>
    %c0_1 = arith.constant 0 : index
    %c0_2 = arith.constant 0 : index
    %1 = vector.load %arg2[%c0_1, %c0_2] : memref<128x2xf32, #tpu.memory_space<vmem>>, vector<128x1xf32>
    %2 = vector.extract_strided_slice %0 {offsets = [0, 0], sizes = [1, 128], strides = [1, 1]} : vector<2x128xf32> to vector<1x128xf32>
    %3 = vector.broadcast %1 : vector<128x1xf32> to vector<128x128xf32>
    %4 = vector.broadcast %2 : vector<1x128xf32> to vector<128x128xf32>
    %5 = arith.mulf %3, %4 : vector<128x128xf32>
    %c0_3 = arith.constant 0 : index
    %c1 = arith.constant 1 : index
    %6 = vector.load %arg2[%c0_3, %c1] : memref<128x2xf32, #tpu.memory_space<vmem>>, vector<128x1xf32>
    %7 = vector.extract_strided_slice %0 {offsets = [1, 0], sizes = [1, 128], strides = [1, 1]} : vector<2x128xf32> to vector<1x128xf32>
    %8 = vector.broadcast %6 : vector<128x1xf32> to vector<128x128xf32>
    %9 = vector.broadcast %7 : vector<1x128xf32> to vector<128x128xf32>
    %10 = arith.mulf %8, %9 : vector<128x128xf32>
    %11 = arith.addf %5, %10 : vector<128x128xf32>
    %c0_4 = arith.constant 0 : index
    %c0_5 = arith.constant 0 : index
    %12 = vector.load %arg3[%c0_4, %c0_5] : memref<128x1xf32, #tpu.memory_space<vmem>>, vector<128x1xf32>
    %13 = vector.broadcast %12 : vector<128x1xf32> to vector<128x128xf32>
    %14 = arith.addf %11, %13 : vector<128x128xf32>
    %cst = arith.constant 0.000000e+00 : f32
    %15 = vector.broadcast %cst : f32 to vector<128x128xf32>
    %16 = arith.cmpf ogt, %14, %15 : vector<128x128xf32>
    %cst_6 = arith.constant 0.00999999977 : f32
    %17 = vector.broadcast %cst_6 : f32 to vector<128x128xf32>
    %18 = arith.mulf %17, %14 : vector<128x128xf32>
    %19 = arith.select %16, %14, %18 : vector<128x128xi1>, vector<128x128xf32>
    %c0_7 = arith.constant 0 : index
    %c0_8 = arith.constant 0 : index
    %20 = vector.load %arg4[%c0_7, %c0_8] : memref<128x128xf32, #tpu.memory_space<vmem>>, vector<128x128xf32>
    %cst_9 = arith.constant dense<0.000000e+00> : vector<128x128xf32>
    %21 = tpu.matmul %20, %19, %cst_9 {dimension_numbers = #tpu.dot_dimension_numbers<[1], [0], [0], [1], [0, 0, 1, 1], [], []>} : vector<128x128xf32>, vector<128x128xf32>, vector<128x128xf32> -> vector<128x128xf32>
    %c0_10 = arith.constant 0 : index
    %c0_11 = arith.constant 0 : index
    %22 = vector.load %arg5[%c0_10, %c0_11] : memref<128x1xf32, #tpu.memory_space<vmem>>, vector<128x1xf32>
    %23 = vector.broadcast %22 : vector<128x1xf32> to vector<128x128xf32>
    %24 = arith.addf %21, %23 : vector<128x128xf32>
    %cst_12 = arith.constant 0.000000e+00 : f32
    %25 = vector.broadcast %cst_12 : f32 to vector<128x128xf32>
    %26 = arith.cmpf ogt, %24, %25 : vector<128x128xf32>
    %cst_13 = arith.constant 0.00999999977 : f32
    %27 = vector.broadcast %cst_13 : f32 to vector<128x128xf32>
    %28 = arith.mulf %27, %24 : vector<128x128xf32>
    %29 = arith.select %26, %24, %28 : vector<128x128xi1>, vector<128x128xf32>
    %c0_14 = arith.constant 0 : index
    %c0_15 = arith.constant 0 : index
    %30 = vector.load %arg6[%c0_14, %c0_15] : memref<128x128xf32, #tpu.memory_space<vmem>>, vector<128x128xf32>
    %cst_16 = arith.constant dense<0.000000e+00> : vector<128x128xf32>
    %31 = tpu.matmul %30, %29, %cst_16 {dimension_numbers = #tpu.dot_dimension_numbers<[1], [0], [0], [1], [0, 0, 1, 1], [], []>} : vector<128x128xf32>, vector<128x128xf32>, vector<128x128xf32> -> vector<128x128xf32>
    %c0_17 = arith.constant 0 : index
    %c0_18 = arith.constant 0 : index
    %32 = vector.load %arg7[%c0_17, %c0_18] : memref<128x1xf32, #tpu.memory_space<vmem>>, vector<128x1xf32>
    %33 = vector.broadcast %32 : vector<128x1xf32> to vector<128x128xf32>
    %34 = arith.addf %31, %33 : vector<128x128xf32>
    %cst_19 = arith.constant 0.000000e+00 : f32
    %35 = vector.broadcast %cst_19 : f32 to vector<128x128xf32>
    %36 = arith.cmpf ogt, %34, %35 : vector<128x128xf32>
    %cst_20 = arith.constant 0.00999999977 : f32
    %37 = vector.broadcast %cst_20 : f32 to vector<128x128xf32>
    %38 = arith.mulf %37, %34 : vector<128x128xf32>
    %39 = arith.select %36, %34, %38 : vector<128x128xi1>, vector<128x128xf32>
    %c0_21 = arith.constant 0 : index
    %c0_22 = arith.constant 0 : index
    %40 = vector.load %arg8[%c0_21, %c0_22] : memref<2x128xf32, #tpu.memory_space<vmem>>, vector<2x128xf32>
    %cst_23 = arith.constant dense<0.000000e+00> : vector<2x128xf32>
    %41 = tpu.matmul %40, %39, %cst_23 {dimension_numbers = #tpu.dot_dimension_numbers<[1], [0], [0], [1], [0, 0, 1, 1], [], []>} : vector<2x128xf32>, vector<128x128xf32>, vector<2x128xf32> -> vector<2x128xf32>
    %c0_24 = arith.constant 0 : index
    %c0_25 = arith.constant 0 : index
    %42 = vector.load %arg9[%c0_24, %c0_25] : memref<2x1xf32, #tpu.memory_space<vmem>>, vector<2x1xf32>
    %43 = vector.broadcast %42 : vector<2x1xf32> to vector<2x128xf32>
    %44 = arith.addf %41, %43 : vector<2x128xf32>
    %c0_26 = arith.constant 0 : index
    %c0_27 = arith.constant 0 : index
    %45 = vector.load %arg10[%c0_26, %c0_27] : memref<2x128xf32, #tpu.memory_space<vmem>>, vector<2x128xf32>
    tpu.vector_store %arg10[%c0_26, %c0_27], %44 {strides = array<i32>} : memref<2x128xf32, #tpu.memory_space<vmem>>, vector<2x128xf32>,
    return
  }
  func.func @transform_0(%arg0: i32) -> (i32, i32) {
    %c0_i32 = arith.constant 0 : i32
    %c0_i32_0 = arith.constant 0 : i32
    return %c0_i32, %arg0 : i32, i32
  }
  func.func @transform_1(%arg0: i32) -> (i32, i32) {
    %c0_i32 = arith.constant 0 : i32
    %c0_i32_0 = arith.constant 0 : i32
    %c0_i32_1 = arith.constant 0 : i32
    return %c0_i32, %c0_i32_0 : i32, i32
  }
  func.func @transform_2(%arg0: i32) -> (i32, i32) {
    %c0_i32 = arith.constant 0 : i32
    %c0_i32_0 = arith.constant 0 : i32
    %c0_i32_1 = arith.constant 0 : i32
    return %c0_i32, %c0_i32_0 : i32, i32
  }
  func.func @transform_3(%arg0: i32) -> (i32, i32) {
    %c0_i32 = arith.constant 0 : i32
    %c0_i32_0 = arith.constant 0 : i32
    %c0_i32_1 = arith.constant 0 : i32
    return %c0_i32, %c0_i32_0 : i32, i32
  }
  func.func @transform_4(%arg0: i32) -> (i32, i32) {
    %c0_i32 = arith.constant 0 : i32
    %c0_i32_0 = arith.constant 0 : i32
    %c0_i32_1 = arith.constant 0 : i32
    return %c0_i32, %c0_i32_0 : i32, i32
  }
  func.func @transform_5(%arg0: i32) -> (i32, i32) {
    %c0_i32 = arith.constant 0 : i32
    %c0_i32_0 = arith.constant 0 : i32
    %c0_i32_1 = arith.constant 0 : i32
    return %c0_i32, %c0_i32_0 : i32, i32
  }
  func.func @transform_6(%arg0: i32) -> (i32, i32) {
    %c0_i32 = arith.constant 0 : i32
    %c0_i32_0 = arith.constant 0 : i32
    %c0_i32_1 = arith.constant 0 : i32
    return %c0_i32, %c0_i32_0 : i32, i32
  }
  func.func @transform_7(%arg0: i32) -> (i32, i32) {
    %c0_i32 = arith.constant 0 : i32
    %c0_i32_0 = arith.constant 0 : i32
    %c0_i32_1 = arith.constant 0 : i32
    return %c0_i32, %c0_i32_0 : i32, i32
  }
  func.func @transform_8(%arg0: i32) -> (i32, i32) {
    %c0_i32 = arith.constant 0 : i32
    %c0_i32_0 = arith.constant 0 : i32
    %c0_i32_1 = arith.constant 0 : i32
    return %c0_i32, %c0_i32_0 : i32, i32
  }
  func.func @transform_9(%arg0: i32) -> (i32, i32) {
    %c0_i32 = arith.constant 0 : i32
    %c0_i32_0 = arith.constant 0 : i32
    return %c0_i32, %arg0 : i32, i32
  }
}

</mosaic_0001>

<llo_original>
// kernel: tpu_custom_call.1
$region0: #{tpu_custom_call.1}
  #allocation0 [shape = 'u32[]', space=smem, size = 0x4, offset = 0x4, fixed_abs, tag = 'smem constant byte address 0x4 - core index']
  #allocation1 [shape = 'u32[144,128]{1,0:T(1,128)}', space=vmem, size = 0x12000, scoped, tag = 'internal scratch']
  %s0 = inlined_call_operand.vmem [shape: f32[2,128], index: 0, kind: input, shape index: {}]
  %s1 = inlined_call_operand.vmem [shape: f32[128,2], index: 1, kind: input, shape index: {}]
  %s2 = inlined_call_operand.vmem [shape: f32[128,1], index: 2, kind: input, shape index: {}]
  %s3 = inlined_call_operand.vmem [shape: f32[128,128], index: 3, kind: input, shape index: {}]
  %s4 = inlined_call_operand.vmem [shape: f32[128,1], index: 4, kind: input, shape index: {}]
  %s5 = inlined_call_operand.vmem [shape: f32[128,128], index: 5, kind: input, shape index: {}]
  %s6 = inlined_call_operand.vmem [shape: f32[128,1], index: 6, kind: input, shape index: {}]
  %s7 = inlined_call_operand.vmem [shape: f32[2,128], index: 7, kind: input, shape index: {}]
  %s8 = inlined_call_operand.vmem [shape: f32[2,1], index: 8, kind: input, shape index: {}]
  %s9 = inlined_call_operand.hbm [shape: f32[2,128], index: 9, kind: output, shape index: {}]
  %s10 = sld [smem:[#allocation0]]
  $region46: #{tpu_custom_call.1} parent=0
    _
  %s12 = ssub.s32 1, %s10
  %s13 = scalar_select 0, %s12, %s10
  $region1: #{tpu_custom_call.1} parent=0
    #allocation2 [shape = 'u8[1024]{0}', space=vmem, size = 0x400, scoped, tag = 'output window, operand 0, single buffered']
    #allocation3 [shape = 's32[1]{0}', space=sflag, size = 0x4, scoped, tag = 'scoped memory for tpu_custom_call.1']
    %14 = vsyncpa [#allocation3], 0
    // Predicated region
    $region2: #{tpu_custom_call.1} parent=1 // pred_check
      _
    $region3: #{tpu_custom_call.1} parent=1 // pred_check_branch
      %16 = sbr.rel (0) target = $region5
    $region4: #{tpu_custom_call.1} parent=1 // pred_region
      _
    $region5: #{tpu_custom_call.1} parent=1 // pred_fallthru
      _
    // Predicated region
    $region6: #{tpu_custom_call.1} parent=1 // pred_check
      _
    $region7: #{tpu_custom_call.1} parent=1 // pred_check_branch
      %18 = sbr.rel (0) target = $region9
    $region8: #{tpu_custom_call.1} parent=1 // pred_region
      _
    $region9: #{tpu_custom_call.1} parent=1 // pred_fallthru
      _
    // Predicated region
    $region10: #{tpu_custom_call.1} parent=1 // pred_check
      _
    $region11: #{tpu_custom_call.1} parent=1 // pred_check_branch
      %20 = sbr.rel (0) target = $region13
    $region12: #{tpu_custom_call.1} parent=1 // pred_region
      _
    $region13: #{tpu_custom_call.1} parent=1 // pred_fallthru
      _
    // Predicated region
    $region14: #{tpu_custom_call.1} parent=1 // pred_check
      _
    $region15: #{tpu_custom_call.1} parent=1 // pred_check_branch
      %22 = sbr.rel (0) target = $region17
    $region16: #{tpu_custom_call.1} parent=1 // pred_region
      _
    $region17: #{tpu_custom_call.1} parent=1 // pred_fallthru
      _
    // Predicated region
    $region18: #{tpu_custom_call.1} parent=1 // pred_check
      _
    $region19: #{tpu_custom_call.1} parent=1 // pred_check_branch
      %24 = sbr.rel (0) target = $region21
    $region20: #{tpu_custom_call.1} parent=1 // pred_region
      _
    $region21: #{tpu_custom_call.1} parent=1 // pred_fallthru
      _
    // Predicated region
    $region22: #{tpu_custom_call.1} parent=1 // pred_check
      _
    $region23: #{tpu_custom_call.1} parent=1 // pred_check_branch
      %26 = sbr.rel (0) target = $region25
    $region24: #{tpu_custom_call.1} parent=1 // pred_region
      _
    $region25: #{tpu_custom_call.1} parent=1 // pred_fallthru
      _
    // Predicated region
    $region26: #{tpu_custom_call.1} parent=1 // pred_check
      _
    $region27: #{tpu_custom_call.1} parent=1 // pred_check_branch
      %28 = sbr.rel (0) target = $region29
    $region28: #{tpu_custom_call.1} parent=1 // pred_region
      _
    $region29: #{tpu_custom_call.1} parent=1 // pred_fallthru
      _
    // Predicated region
    $region30: #{tpu_custom_call.1} parent=1 // pred_check
      _
    $region31: #{tpu_custom_call.1} parent=1 // pred_check_branch
      %30 = sbr.rel (0) target = $region33
    $region32: #{tpu_custom_call.1} parent=1 // pred_region
      _
    $region33: #{tpu_custom_call.1} parent=1 // pred_fallthru
      _
    // Predicated region
    $region34: #{tpu_custom_call.1} parent=1 // pred_check
      _
    $region35: #{tpu_custom_call.1} parent=1 // pred_check_branch
      %32 = sbr.rel (0) target = $region37
    $region36: #{tpu_custom_call.1} parent=1 // pred_region
      _
    $region37: #{tpu_custom_call.1} parent=1 // pred_fallthru
      _
    %v33 = vld [vmem:[%s0] sm:$0x3]
    %v34 = vld [vmem:[%s1] sm:$0xff]
    %v35 = vld [vmem:[%s1 + $0x8] sm:$0xff]
    %v36 = vld [vmem:[%s1 + $0x10] sm:$0xff]
    %v37 = vld [vmem:[%s1 + $0x18] sm:$0xff]
    %v38 = vld [vmem:[%s1 + $0x20] sm:$0xff]
    %v39 = vld [vmem:[%s1 + $0x28] sm:$0xff]
    %v40 = vld [vmem:[%s1 + $0x30] sm:$0xff]
    %v41 = vld [vmem:[%s1 + $0x38] sm:$0xff]
    %v42 = vld [vmem:[%s1 + $0x40] sm:$0xff]
    %v43 = vld [vmem:[%s1 + $0x48] sm:$0xff]
    %v44 = vld [vmem:[%s1 + $0x50] sm:$0xff]
    %v45 = vld [vmem:[%s1 + $0x58] sm:$0xff]
    %v46 = vld [vmem:[%s1 + $0x60] sm:$0xff]
    %v47 = vld [vmem:[%s1 + $0x68] sm:$0xff]
    %v48 = vld [vmem:[%s1 + $0x70] sm:$0xff]
    %v49 = vld [vmem:[%s1 + $0x78] sm:$0xff]
    %51 = vset.pattern.permute.xlu0 0
    %52 = vperm.xlu0 %51, %v34
    %v53 = vpop.permute.xlu0 %52
    %56 = vset.pattern.permute.xlu0 0
    %57 = vperm.xlu0 %56, %v35
    %v58 = vpop.permute.xlu0 %57
    %61 = vset.pattern.permute.xlu0 0
    %62 = vperm.xlu0 %61, %v36
    %v63 = vpop.permute.xlu0 %62
    %66 = vset.pattern.permute.xlu0 0
    %67 = vperm.xlu0 %66, %v37
    %v68 = vpop.permute.xlu0 %67
    %71 = vset.pattern.permute.xlu0 0
    %72 = vperm.xlu0 %71, %v38
    %v73 = vpop.permute.xlu0 %72
    %76 = vset.pattern.permute.xlu0 0
    %77 = vperm.xlu0 %76, %v39
    %v78 = vpop.permute.xlu0 %77
    %81 = vset.pattern.permute.xlu0 0
    %82 = vperm.xlu0 %81, %v40
    %v83 = vpop.permute.xlu0 %82
    %86 = vset.pattern.permute.xlu0 0
    %87 = vperm.xlu0 %86, %v41
    %v88 = vpop.permute.xlu0 %87
    %91 = vset.pattern.permute.xlu0 0
    %92 = vperm.xlu0 %91, %v42
    %v93 = vpop.permute.xlu0 %92
    %96 = vset.pattern.permute.xlu0 0
    %97 = vperm.xlu0 %96, %v43
    %v98 = vpop.permute.xlu0 %97
    %101 = vset.pattern.permute.xlu0 0
    %102 = vperm.xlu0 %101, %v44
    %v103 = vpop.permute.xlu0 %102
    %106 = vset.pattern.permute.xlu0 0
    %107 = vperm.xlu0 %106, %v45
    %v108 = vpop.permute.xlu0 %107
    %111 = vset.pattern.permute.xlu0 0
    %112 = vperm.xlu0 %111, %v46
    %v113 = vpop.permute.xlu0 %112
    %116 = vset.pattern.permute.xlu0 0
    %117 = vperm.xlu0 %116, %v47
    %v118 = vpop.permute.xlu0 %117
    %121 = vset.pattern.permute.xlu0 0
    %122 = vperm.xlu0 %121, %v48
    %v123 = vpop.permute.xlu0 %122
    %126 = vset.pattern.permute.xlu0 0
    %127 = vperm.xlu0 %126, %v49
    %v128 = vpop.permute.xlu0 %127
    %v130 = vlaneseq
    %v131 = vshrl.u32 %v130, 7
    %v132 = vsub.s32 0, %v131
    %v133 = vrot.slane %v33, %v132
    %v134 = vmul.f32 %v53, %v133
    %v135 = vmul.f32 %v58, %v133
    %v136 = vmul.f32 %v63, %v133
    %v137 = vmul.f32 %v68, %v133
    %v138 = vmul.f32 %v73, %v133
    %v139 = vmul.f32 %v78, %v133
    %v140 = vmul.f32 %v83, %v133
    %v141 = vmul.f32 %v88, %v133
    %v142 = vmul.f32 %v93, %v133
    %v143 = vmul.f32 %v98, %v133
    %v144 = vmul.f32 %v103, %v133
    %v145 = vmul.f32 %v108, %v133
    %v146 = vmul.f32 %v113, %v133
    %v147 = vmul.f32 %v118, %v133
    %v148 = vmul.f32 %v123, %v133
    %v149 = vmul.f32 %v128, %v133
    %150 = vset.pattern.permute.xlu0 1
    %151 = vperm.xlu0 %150, %v34
    %v152 = vpop.permute.xlu0 %151
    %154 = vset.pattern.permute.xlu0 1
    %155 = vperm.xlu0 %154, %v35
    %v156 = vpop.permute.xlu0 %155
    %158 = vset.pattern.permute.xlu0 1
    %159 = vperm.xlu0 %158, %v36
    %v160 = vpop.permute.xlu0 %159
    %162 = vset.pattern.permute.xlu0 1
    %163 = vperm.xlu0 %162, %v37
    %v164 = vpop.permute.xlu0 %163
    %166 = vset.pattern.permute.xlu0 1
    %167 = vperm.xlu0 %166, %v38
    %v168 = vpop.permute.xlu0 %167
    %170 = vset.pattern.permute.xlu0 1
    %171 = vperm.xlu0 %170, %v39
    %v172 = vpop.permute.xlu0 %171
    %174 = vset.pattern.permute.xlu0 1
    %175 = vperm.xlu0 %174, %v40
    %v176 = vpop.permute.xlu0 %175
    %178 = vset.pattern.permute.xlu0 1
    %179 = vperm.xlu0 %178, %v41
    %v180 = vpop.permute.xlu0 %179
    %182 = vset.pattern.permute.xlu0 1
    %183 = vperm.xlu0 %182, %v42
    %v184 = vpop.permute.xlu0 %183
    %186 = vset.pattern.permute.xlu0 1
    %187 = vperm.xlu0 %186, %v43
    %v188 = vpop.permute.xlu0 %187
    %190 = vset.pattern.permute.xlu0 1
    %191 = vperm.xlu0 %190, %v44
    %v192 = vpop.permute.xlu0 %191
    %194 = vset.pattern.permute.xlu0 1
    %195 = vperm.xlu0 %194, %v45
    %v196 = vpop.permute.xlu0 %195
    %198 = vset.pattern.permute.xlu0 1
    %199 = vperm.xlu0 %198, %v46
    %v200 = vpop.permute.xlu0 %199
    %202 = vset.pattern.permute.xlu0 1
    %203 = vperm.xlu0 %202, %v47
    %v204 = vpop.permute.xlu0 %203
    %206 = vset.pattern.permute.xlu0 1
    %207 = vperm.xlu0 %206, %v48
    %v208 = vpop.permute.xlu0 %207
    %210 = vset.pattern.permute.xlu0 1
    %211 = vperm.xlu0 %210, %v49
    %v212 = vpop.permute.xlu0 %211
    %v214 = vlaneseq
    %v215 = vshrl.u32 %v214, 7
    %v216 = vsub.s32 1, %v215
    %v217 = vrot.slane %v33, %v216
    %v218 = vmul.f32 %v152, %v217
    %v219 = vmul.f32 %v156, %v217
    %v220 = vmul.f32 %v160, %v217
    %v221 = vmul.f32 %v164, %v217
    %v222 = vmul.f32 %v168, %v217
    %v223 = vmul.f32 %v172, %v217
    %v224 = vmul.f32 %v176, %v217
    %v225 = vmul.f32 %v180, %v217
    %v226 = vmul.f32 %v184, %v217
    %v227 = vmul.f32 %v188, %v217
    %v228 = vmul.f32 %v192, %v217
    %v229 = vmul.f32 %v196, %v217
    %v230 = vmul.f32 %v200, %v217
    %v231 = vmul.f32 %v204, %v217
    %v232 = vmul.f32 %v208, %v217
    %v233 = vmul.f32 %v212, %v217
    %v234 = vadd.f32 %v134, %v218
    %v235 = vadd.f32 %v135, %v219
    %v236 = vadd.f32 %v136, %v220
    %v237 = vadd.f32 %v137, %v221
    %v238 = vadd.f32 %v138, %v222
    %v239 = vadd.f32 %v139, %v223
    %v240 = vadd.f32 %v140, %v224
    %v241 = vadd.f32 %v141, %v225
    %v242 = vadd.f32 %v142, %v226
    %v243 = vadd.f32 %v143, %v227
    %v244 = vadd.f32 %v144, %v228
    %v245 = vadd.f32 %v145, %v229
    %v246 = vadd.f32 %v146, %v230
    %v247 = vadd.f32 %v147, %v231
    %v248 = vadd.f32 %v148, %v232
    %v249 = vadd.f32 %v149, %v233
    %v250 = vld [vmem:[%s2] sm:$0xff]
    %v251 = vld [vmem:[%s2 + $0x8] sm:$0xff]
    %v252 = vld [vmem:[%s2 + $0x10] sm:$0xff]
    %v253 = vld [vmem:[%s2 + $0x18] sm:$0xff]
    %v254 = vld [vmem:[%s2 + $0x20] sm:$0xff]
    %v255 = vld [vmem:[%s2 + $0x28] sm:$0xff]
    %v256 = vld [vmem:[%s2 + $0x30] sm:$0xff]
    %v257 = vld [vmem:[%s2 + $0x38] sm:$0xff]
    %v258 = vld [vmem:[%s2 + $0x40] sm:$0xff]
    %v259 = vld [vmem:[%s2 + $0x48] sm:$0xff]
    %v260 = vld [vmem:[%s2 + $0x50] sm:$0xff]
    %v261 = vld [vmem:[%s2 + $0x58] sm:$0xff]
    %v262 = vld [vmem:[%s2 + $0x60] sm:$0xff]
    %v263 = vld [vmem:[%s2 + $0x68] sm:$0xff]
    %v264 = vld [vmem:[%s2 + $0x70] sm:$0xff]
    %v265 = vld [vmem:[%s2 + $0x78] sm:$0xff]
    %267 = vset.pattern.permute.xlu0 0
    %268 = vperm.xlu0 %267, %v250
    %v269 = vpop.permute.xlu0 %268
    %272 = vset.pattern.permute.xlu0 0
    %273 = vperm.xlu0 %272, %v251
    %v274 = vpop.permute.xlu0 %273
    %277 = vset.pattern.permute.xlu0 0
    %278 = vperm.xlu0 %277, %v252
    %v279 = vpop.permute.xlu0 %278
    %282 = vset.pattern.permute.xlu0 0
    %283 = vperm.xlu0 %282, %v253
    %v284 = vpop.permute.xlu0 %283
    %287 = vset.pattern.permute.xlu0 0
    %288 = vperm.xlu0 %287, %v254
    %v289 = vpop.permute.xlu0 %288
    %292 = vset.pattern.permute.xlu0 0
    %293 = vperm.xlu0 %292, %v255
    %v294 = vpop.permute.xlu0 %293
    %297 = vset.pattern.permute.xlu0 0
    %298 = vperm.xlu0 %297, %v256
    %v299 = vpop.permute.xlu0 %298
    %302 = vset.pattern.permute.xlu0 0
    %303 = vperm.xlu0 %302, %v257
    %v304 = vpop.permute.xlu0 %303
    %307 = vset.pattern.permute.xlu0 0
    %308 = vperm.xlu0 %307, %v258
    %v309 = vpop.permute.xlu0 %308
    %312 = vset.pattern.permute.xlu0 0
    %313 = vperm.xlu0 %312, %v259
    %v314 = vpop.permute.xlu0 %313
    %317 = vset.pattern.permute.xlu0 0
    %318 = vperm.xlu0 %317, %v260
    %v319 = vpop.permute.xlu0 %318
    %322 = vset.pattern.permute.xlu0 0
    %323 = vperm.xlu0 %322, %v261
    %v324 = vpop.permute.xlu0 %323
    %327 = vset.pattern.permute.xlu0 0
    %328 = vperm.xlu0 %327, %v262
    %v329 = vpop.permute.xlu0 %328
    %332 = vset.pattern.permute.xlu0 0
    %333 = vperm.xlu0 %332, %v263
    %v334 = vpop.permute.xlu0 %333
    %337 = vset.pattern.permute.xlu0 0
    %338 = vperm.xlu0 %337, %v264
    %v339 = vpop.permute.xlu0 %338
    %342 = vset.pattern.permute.xlu0 0
    %343 = vperm.xlu0 %342, %v265
    %v344 = vpop.permute.xlu0 %343
    %v346 = vadd.f32 %v234, %v269
    %v347 = vadd.f32 %v235, %v274
    %v348 = vadd.f32 %v236, %v279
    %v349 = vadd.f32 %v237, %v284
    %v350 = vadd.f32 %v238, %v289
    %v351 = vadd.f32 %v239, %v294
    %v352 = vadd.f32 %v240, %v299
    %v353 = vadd.f32 %v241, %v304
    %v354 = vadd.f32 %v242, %v309
    %v355 = vadd.f32 %v243, %v314
    %v356 = vadd.f32 %v244, %v319
    %v357 = vadd.f32 %v245, %v324
    %v358 = vadd.f32 %v246, %v329
    %v359 = vadd.f32 %v247, %v334
    %v360 = vadd.f32 %v248, %v339
    %v361 = vadd.f32 %v249, %v344
    %vm362 = vcmp.gt.f32.partialorder %v346, 0.0
    %vm363 = vcmp.gt.f32.partialorder %v347, 0.0
    %vm364 = vcmp.gt.f32.partialorder %v348, 0.0
    %vm365 = vcmp.gt.f32.partialorder %v349, 0.0
    %vm366 = vcmp.gt.f32.partialorder %v350, 0.0
    %vm367 = vcmp.gt.f32.partialorder %v351, 0.0
    %vm368 = vcmp.gt.f32.partialorder %v352, 0.0
    %vm369 = vcmp.gt.f32.partialorder %v353, 0.0
    %vm370 = vcmp.gt.f32.partialorder %v354, 0.0
    %vm371 = vcmp.gt.f32.partialorder %v355, 0.0
    %vm372 = vcmp.gt.f32.partialorder %v356, 0.0
    %vm373 = vcmp.gt.f32.partialorder %v357, 0.0
    %vm374 = vcmp.gt.f32.partialorder %v358, 0.0
    %vm375 = vcmp.gt.f32.partialorder %v359, 0.0
    %vm376 = vcmp.gt.f32.partialorder %v360, 0.0
    %vm377 = vcmp.gt.f32.partialorder %v361, 0.0
    %v378 = vmul.f32 %v346, 0.01
    %v379 = vmul.f32 %v347, 0.01
    %v380 = vmul.f32 %v348, 0.01
    %v381 = vmul.f32 %v349, 0.01
    %v382 = vmul.f32 %v350, 0.01
    %v383 = vmul.f32 %v351, 0.01
    %v384 = vmul.f32 %v352, 0.01
    %v385 = vmul.f32 %v353, 0.01
    %v386 = vmul.f32 %v354, 0.01
    %v387 = vmul.f32 %v355, 0.01
    %v388 = vmul.f32 %v356, 0.01
    %v389 = vmul.f32 %v357, 0.01
    %v390 = vmul.f32 %v358, 0.01
    %v391 = vmul.f32 %v359, 0.01
    %v392 = vmul.f32 %v360, 0.01
    %v393 = vmul.f32 %v361, 0.01
    %v394 = vsel %vm362, %v346, %v378
    %v395 = vsel %vm363, %v347, %v379
    %v396 = vsel %vm364, %v348, %v380
    %v397 = vsel %vm365, %v349, %v381
    %v398 = vsel %vm366, %v350, %v382
    %v399 = vsel %vm367, %v351, %v383
    %v400 = vsel %vm368, %v352, %v384
    %v401 = vsel %vm369, %v353, %v385
    %v402 = vsel %vm370, %v354, %v386
    %v403 = vsel %vm371, %v355, %v387
    %v404 = vsel %vm372, %v356, %v388
    %v405 = vsel %vm373, %v357, %v389
    %v406 = vsel %vm374, %v358, %v390
    %v407 = vsel %vm375, %v359, %v391
    %v408 = vsel %vm376, %v360, %v392
    %v409 = vsel %vm377, %v361, %v393
    %v410 = vld [vmem:[%s3] sm:$0xff]
    %v411 = vld [vmem:[%s3 + $0x8] sm:$0xff]
    %v412 = vld [vmem:[%s3 + $0x10] sm:$0xff]
    %v413 = vld [vmem:[%s3 + $0x18] sm:$0xff]
    %v414 = vld [vmem:[%s3 + $0x20] sm:$0xff]
    %v415 = vld [vmem:[%s3 + $0x28] sm:$0xff]
    %v416 = vld [vmem:[%s3 + $0x30] sm:$0xff]
    %v417 = vld [vmem:[%s3 + $0x38] sm:$0xff]
    %v418 = vld [vmem:[%s3 + $0x40] sm:$0xff]
    %v419 = vld [vmem:[%s3 + $0x48] sm:$0xff]
    %v420 = vld [vmem:[%s3 + $0x50] sm:$0xff]
    %v421 = vld [vmem:[%s3 + $0x58] sm:$0xff]
    %v422 = vld [vmem:[%s3 + $0x60] sm:$0xff]
    %v423 = vld [vmem:[%s3 + $0x68] sm:$0xff]
    %v424 = vld [vmem:[%s3 + $0x70] sm:$0xff]
    %v425 = vld [vmem:[%s3 + $0x78] sm:$0xff]
    %v426 = vld [vmem:[%s4] sm:$0xff]
    %v427 = vld [vmem:[%s4 + $0x8] sm:$0xff]
    %v428 = vld [vmem:[%s4 + $0x10] sm:$0xff]
    %v429 = vld [vmem:[%s4 + $0x18] sm:$0xff]
    %v430 = vld [vmem:[%s4 + $0x20] sm:$0xff]
    %v431 = vld [vmem:[%s4 + $0x28] sm:$0xff]
    %v432 = vld [vmem:[%s4 + $0x30] sm:$0xff]
    %v433 = vld [vmem:[%s4 + $0x38] sm:$0xff]
    %v434 = vld [vmem:[%s4 + $0x40] sm:$0xff]
    %v435 = vld [vmem:[%s4 + $0x48] sm:$0xff]
    %v436 = vld [vmem:[%s4 + $0x50] sm:$0xff]
    %v437 = vld [vmem:[%s4 + $0x58] sm:$0xff]
    %v438 = vld [vmem:[%s4 + $0x60] sm:$0xff]
    %v439 = vld [vmem:[%s4 + $0x68] sm:$0xff]
    %v440 = vld [vmem:[%s4 + $0x70] sm:$0xff]
    %v441 = vld [vmem:[%s4 + $0x78] sm:$0xff]
    %443 = vset.pattern.permute.xlu0 0
    %444 = vperm.xlu0 %443, %v426
    %v445 = vpop.permute.xlu0 %444
    %448 = vset.pattern.permute.xlu0 0
    %449 = vperm.xlu0 %448, %v427
    %v450 = vpop.permute.xlu0 %449
    %453 = vset.pattern.permute.xlu0 0
    %454 = vperm.xlu0 %453, %v428
    %v455 = vpop.permute.xlu0 %454
    %458 = vset.pattern.permute.xlu0 0
    %459 = vperm.xlu0 %458, %v429
    %v460 = vpop.permute.xlu0 %459
    %463 = vset.pattern.permute.xlu0 0
    %464 = vperm.xlu0 %463, %v430
    %v465 = vpop.permute.xlu0 %464
    %468 = vset.pattern.permute.xlu0 0
    %469 = vperm.xlu0 %468, %v431
    %v470 = vpop.permute.xlu0 %469
    %473 = vset.pattern.permute.xlu0 0
    %474 = vperm.xlu0 %473, %v432
    %v475 = vpop.permute.xlu0 %474
    %478 = vset.pattern.permute.xlu0 0
    %479 = vperm.xlu0 %478, %v433
    %v480 = vpop.permute.xlu0 %479
    %483 = vset.pattern.permute.xlu0 0
    %484 = vperm.xlu0 %483, %v434
    %v485 = vpop.permute.xlu0 %484
    %488 = vset.pattern.permute.xlu0 0
    %489 = vperm.xlu0 %488, %v435
    %v490 = vpop.permute.xlu0 %489
    %493 = vset.pattern.permute.xlu0 0
    %494 = vperm.xlu0 %493, %v436
    %v495 = vpop.permute.xlu0 %494
    %498 = vset.pattern.permute.xlu0 0
    %499 = vperm.xlu0 %498, %v437
    %v500 = vpop.permute.xlu0 %499
    %503 = vset.pattern.permute.xlu0 0
    %504 = vperm.xlu0 %503, %v438
    %v505 = vpop.permute.xlu0 %504
    %508 = vset.pattern.permute.xlu0 0
    %509 = vperm.xlu0 %508, %v439
    %v510 = vpop.permute.xlu0 %509
    %513 = vset.pattern.permute.xlu0 0
    %514 = vperm.xlu0 %513, %v440
    %v515 = vpop.permute.xlu0 %514
    %518 = vset.pattern.permute.xlu0 0
    %519 = vperm.xlu0 %518, %v441
    %v520 = vpop.permute.xlu0 %519
    %522 = vmatprep.subr.mxu0 0.0
    %523 = vmatpush1.msra.mxu0 %v409
    %524 = vmatprep.subr.mxu0 0.0
    %525 = vmatpush1.msra.mxu0 %v408
    %526 = vmatprep.subr.mxu0 0.0
    %527 = vmatpush1.msra.mxu0 %v407
    %528 = vmatprep.subr.mxu0 0.0
    %529 = vmatpush1.msra.mxu0 %v406
    %530 = vmatprep.subr.mxu0 0.0
    %531 = vmatpush1.msra.mxu0 %v405
    %532 = vmatprep.subr.mxu0 0.0
    %533 = vmatpush1.msra.mxu0 %v404
    %534 = vmatprep.subr.mxu0 0.0
    %535 = vmatpush1.msra.mxu0 %v403
    %536 = vmatprep.subr.mxu0 0.0
    %537 = vmatpush1.msra.mxu0 %v402
    %538 = vmatprep.subr.mxu0 0.0
    %539 = vmatpush1.msra.mxu0 %v401
    %540 = vmatprep.subr.mxu0 0.0
    %541 = vmatpush1.msra.mxu0 %v400
    %542 = vmatprep.subr.mxu0 0.0
    %543 = vmatpush1.msra.mxu0 %v399
    %544 = vmatprep.subr.mxu0 0.0
    %545 = vmatpush1.msra.mxu0 %v398
    %546 = vmatprep.subr.mxu0 0.0
    %547 = vmatpush1.msra.mxu0 %v397
    %548 = vmatprep.subr.mxu0 0.0
    %549 = vmatpush1.msra.mxu0 %v396
    %550 = vmatprep.subr.mxu0 0.0
    %551 = vmatpush1.msra.mxu0 %v395
    %552 = vmatprep.subr.mxu0 0.0
    %553 = vmatpush1.msra.mxu0 %v394
    %554 = vmatprep.subr.mxu0 0.0
    %555 = vmatpush2.msra.mxu0 0.0
    %556 = vmatprep.subr.mxu0 0.0
    %557 = vmatpush2.msra.mxu0 0.0
    %558 = vmatprep.subr.mxu0 0.0
    %559 = vmatpush2.msra.mxu0 0.0
    %560 = vmatprep.subr.mxu0 0.0
    %561 = vmatpush2.msra.mxu0 0.0
    %562 = vmatprep.subr.mxu0 0.0
    %563 = vmatpush2.msra.mxu0 0.0
    %564 = vmatprep.subr.mxu0 0.0
    %565 = vmatpush2.msra.mxu0 0.0
    %566 = vmatprep.subr.mxu0 0.0
    %567 = vmatpush2.msra.mxu0 0.0
    %568 = vmatprep.subr.mxu0 0.0
    %569 = vmatpush2.msra.mxu0 0.0
    %570 = vmatprep.subr.mxu0 0.0
    %571 = vmatpush2.msra.mxu0 0.0
    %572 = vmatprep.subr.mxu0 0.0
    %573 = vmatpush2.msra.mxu0 0.0
    %574 = vmatprep.subr.mxu0 0.0
    %575 = vmatpush2.msra.mxu0 0.0
    %576 = vmatprep.subr.mxu0 0.0
    %577 = vmatpush2.msra.mxu0 0.0
    %578 = vmatprep.subr.mxu0 0.0
    %579 = vmatpush2.msra.mxu0 0.0
    %580 = vmatprep.subr.mxu0 0.0
    %581 = vmatpush2.msra.mxu0 0.0
    %582 = vmatprep.subr.mxu0 0.0
    %583 = vmatpush2.msra.mxu0 0.0
    %584 = vmatprep.subr.mxu0 0.0
    %585 = vmatpush2.msra.mxu0 0.0
    %586 = vmatprep.mubr.f32.mxu0 0.0
    %587 = vmatmul.mubr.f32.gmra.mxu0 %v410
    %v588 = vpop.f32.mrf.mxu0
    %v589 = vadd.f32 %v445, %v588
    %v590 = vpop.f32.mrf.mxu0
    %591 = vmatprep.mubr.f32.mxu0 0.0
    %592 = vmatmul.mubr.f32.gmra.mxu0 %v411
    %v593 = vpop.f32.mrf.mxu0
    %v594 = vadd.f32 %v450, %v593
    %v595 = vpop.f32.mrf.mxu0
    %596 = vmatprep.mubr.f32.mxu0 0.0
    %597 = vmatmul.mubr.f32.gmra.mxu0 %v412
    %v598 = vpop.f32.mrf.mxu0
    %v599 = vadd.f32 %v455, %v598
    %v600 = vpop.f32.mrf.mxu0
    %601 = vmatprep.mubr.f32.mxu0 0.0
    %602 = vmatmul.mubr.f32.gmra.mxu0 %v413
    %v603 = vpop.f32.mrf.mxu0
    %v604 = vadd.f32 %v460, %v603
    %v605 = vpop.f32.mrf.mxu0
    %606 = vmatprep.mubr.f32.mxu0 0.0
    %607 = vmatmul.mubr.f32.gmra.mxu0 %v414
    %v608 = vpop.f32.mrf.mxu0
    %v609 = vadd.f32 %v465, %v608
    %v610 = vpop.f32.mrf.mxu0
    %611 = vmatprep.mubr.f32.mxu0 0.0
    %612 = vmatmul.mubr.f32.gmra.mxu0 %v415
    %v613 = vpop.f32.mrf.mxu0
    %v614 = vadd.f32 %v470, %v613
    %v615 = vpop.f32.mrf.mxu0
    %616 = vmatprep.mubr.f32.mxu0 0.0
    %617 = vmatmul.mubr.f32.gmra.mxu0 %v416
    %v618 = vpop.f32.mrf.mxu0
    %v619 = vadd.f32 %v475, %v618
    %v620 = vpop.f32.mrf.mxu0
    %621 = vmatprep.mubr.f32.mxu0 0.0
    %622 = vmatmul.mubr.f32.gmra.mxu0 %v417
    %v623 = vpop.f32.mrf.mxu0
    %v624 = vadd.f32 %v480, %v623
    %v625 = vpop.f32.mrf.mxu0
    %626 = vmatprep.mubr.f32.mxu0 0.0
    %627 = vmatmul.mubr.f32.gmra.mxu0 %v418
    %v628 = vpop.f32.mrf.mxu0
    %v629 = vadd.f32 %v485, %v628
    %v630 = vpop.f32.mrf.mxu0
    %631 = vmatprep.mubr.f32.mxu0 0.0
    %632 = vmatmul.mubr.f32.gmra.mxu0 %v419
    %v633 = vpop.f32.mrf.mxu0
    %v634 = vadd.f32 %v490, %v633
    %v635 = vpop.f32.mrf.mxu0
    %636 = vmatprep.mubr.f32.mxu0 0.0
    %637 = vmatmul.mubr.f32.gmra.mxu0 %v420
    %v638 = vpop.f32.mrf.mxu0
    %v639 = vadd.f32 %v495, %v638
    %v640 = vpop.f32.mrf.mxu0
    %641 = vmatprep.mubr.f32.mxu0 0.0
    %642 = vmatmul.mubr.f32.gmra.mxu0 %v421
    %v643 = vpop.f32.mrf.mxu0
    %v644 = vadd.f32 %v500, %v643
    %v645 = vpop.f32.mrf.mxu0
    %646 = vmatprep.mubr.f32.mxu0 0.0
    %647 = vmatmul.mubr.f32.gmra.mxu0 %v422
    %v648 = vpop.f32.mrf.mxu0
    %v649 = vadd.f32 %v505, %v648
    %v650 = vpop.f32.mrf.mxu0
    %651 = vmatprep.mubr.f32.mxu0 0.0
    %652 = vmatmul.mubr.f32.gmra.mxu0 %v423
    %v653 = vpop.f32.mrf.mxu0
    %v654 = vadd.f32 %v510, %v653
    %v655 = vpop.f32.mrf.mxu0
    %656 = vmatprep.mubr.f32.mxu0 0.0
    %657 = vmatmul.mubr.f32.gmra.mxu0 %v424
    %v658 = vpop.f32.mrf.mxu0
    %v659 = vadd.f32 %v515, %v658
    %v660 = vpop.f32.mrf.mxu0
    %661 = vmatprep.mubr.f32.mxu0 0.0
    %662 = vmatmul.mubr.f32.gmra.mxu0 %v425
    %v663 = vpop.f32.mrf.mxu0
    %v664 = vadd.f32 %v520, %v663
    %v665 = vpop.f32.mrf.mxu0
    %666 = vdwg.mxu0
    %vm667 = vcmp.gt.f32.partialorder %v589, 0.0
    %vm668 = vcmp.gt.f32.partialorder %v594, 0.0
    %vm669 = vcmp.gt.f32.partialorder %v599, 0.0
    %vm670 = vcmp.gt.f32.partialorder %v604, 0.0
    %vm671 = vcmp.gt.f32.partialorder %v609, 0.0
    %vm672 = vcmp.gt.f32.partialorder %v614, 0.0
    %vm673 = vcmp.gt.f32.partialorder %v619, 0.0
    %vm674 = vcmp.gt.f32.partialorder %v624, 0.0
    %vm675 = vcmp.gt.f32.partialorder %v629, 0.0
    %vm676 = vcmp.gt.f32.partialorder %v634, 0.0
    %vm677 = vcmp.gt.f32.partialorder %v639, 0.0
    %vm678 = vcmp.gt.f32.partialorder %v644, 0.0
    %vm679 = vcmp.gt.f32.partialorder %v649, 0.0
    %vm680 = vcmp.gt.f32.partialorder %v654, 0.0
    %vm681 = vcmp.gt.f32.partialorder %v659, 0.0
    %vm682 = vcmp.gt.f32.partialorder %v664, 0.0
    %v683 = vmul.f32 %v589, 0.01
    %v684 = vmul.f32 %v594, 0.01
    %v685 = vmul.f32 %v599, 0.01
    %v686 = vmul.f32 %v604, 0.01
    %v687 = vmul.f32 %v609, 0.01
    %v688 = vmul.f32 %v614, 0.01
    %v689 = vmul.f32 %v619, 0.01
    %v690 = vmul.f32 %v624, 0.01
    %v691 = vmul.f32 %v629, 0.01
    %v692 = vmul.f32 %v634, 0.01
    %v693 = vmul.f32 %v639, 0.01
    %v694 = vmul.f32 %v644, 0.01
    %v695 = vmul.f32 %v649, 0.01
    %v696 = vmul.f32 %v654, 0.01
    %v697 = vmul.f32 %v659, 0.01
    %v698 = vmul.f32 %v664, 0.01
    %v699 = vsel %vm667, %v589, %v683
    %v700 = vsel %vm668, %v594, %v684
    %v701 = vsel %vm669, %v599, %v685
    %v702 = vsel %vm670, %v604, %v686
    %v703 = vsel %vm671, %v609, %v687
    %v704 = vsel %vm672, %v614, %v688
    %v705 = vsel %vm673, %v619, %v689
    %v706 = vsel %vm674, %v624, %v690
    %v707 = vsel %vm675, %v629, %v691
    %v708 = vsel %vm676, %v634, %v692
    %v709 = vsel %vm677, %v639, %v693
    %v710 = vsel %vm678, %v644, %v694
    %v711 = vsel %vm679, %v649, %v695
    %v712 = vsel %vm680, %v654, %v696
    %v713 = vsel %vm681, %v659, %v697
    %v714 = vsel %vm682, %v664, %v698
    %v715 = vld [vmem:[%s5] sm:$0xff]
    %v716 = vld [vmem:[%s5 + $0x8] sm:$0xff]
    %v717 = vld [vmem:[%s5 + $0x10] sm:$0xff]
    %v718 = vld [vmem:[%s5 + $0x18] sm:$0xff]
    %v719 = vld [vmem:[%s5 + $0x20] sm:$0xff]
    %v720 = vld [vmem:[%s5 + $0x28] sm:$0xff]
    %v721 = vld [vmem:[%s5 + $0x30] sm:$0xff]
    %v722 = vld [vmem:[%s5 + $0x38] sm:$0xff]
    %v723 = vld [vmem:[%s5 + $0x40] sm:$0xff]
    %v724 = vld [vmem:[%s5 + $0x48] sm:$0xff]
    %v725 = vld [vmem:[%s5 + $0x50] sm:$0xff]
    %v726 = vld [vmem:[%s5 + $0x58] sm:$0xff]
    %v727 = vld [vmem:[%s5 + $0x60] sm:$0xff]
    %v728 = vld [vmem:[%s5 + $0x68] sm:$0xff]
    %v729 = vld [vmem:[%s5 + $0x70] sm:$0xff]
    %v730 = vld [vmem:[%s5 + $0x78] sm:$0xff]
    %v731 = vld [vmem:[%s6] sm:$0xff]
    %v732 = vld [vmem:[%s6 + $0x8] sm:$0xff]
    %v733 = vld [vmem:[%s6 + $0x10] sm:$0xff]
    %v734 = vld [vmem:[%s6 + $0x18] sm:$0xff]
    %v735 = vld [vmem:[%s6 + $0x20] sm:$0xff]
    %v736 = vld [vmem:[%s6 + $0x28] sm:$0xff]
    %v737 = vld [vmem:[%s6 + $0x30] sm:$0xff]
    %v738 = vld [vmem:[%s6 + $0x38] sm:$0xff]
    %v739 = vld [vmem:[%s6 + $0x40] sm:$0xff]
    %v740 = vld [vmem:[%s6 + $0x48] sm:$0xff]
    %v741 = vld [vmem:[%s6 + $0x50] sm:$0xff]
    %v742 = vld [vmem:[%s6 + $0x58] sm:$0xff]
    %v743 = vld [vmem:[%s6 + $0x60] sm:$0xff]
    %v744 = vld [vmem:[%s6 + $0x68] sm:$0xff]
    %v745 = vld [vmem:[%s6 + $0x70] sm:$0xff]
    %v746 = vld [vmem:[%s6 + $0x78] sm:$0xff]
    %748 = vset.pattern.permute.xlu0 0
    %749 = vperm.xlu0 %748, %v731
    %v750 = vpop.permute.xlu0 %749
    %753 = vset.pattern.permute.xlu0 0
    %754 = vperm.xlu0 %753, %v732
    %v755 = vpop.permute.xlu0 %754
    %758 = vset.pattern.permute.xlu0 0
    %759 = vperm.xlu0 %758, %v733
    %v760 = vpop.permute.xlu0 %759
    %763 = vset.pattern.permute.xlu0 0
    %764 = vperm.xlu0 %763, %v734
    %v765 = vpop.permute.xlu0 %764
    %768 = vset.pattern.permute.xlu0 0
    %769 = vperm.xlu0 %768, %v735
    %v770 = vpop.permute.xlu0 %769
    %773 = vset.pattern.permute.xlu0 0
    %774 = vperm.xlu0 %773, %v736
    %v775 = vpop.permute.xlu0 %774
    %778 = vset.pattern.permute.xlu0 0
    %779 = vperm.xlu0 %778, %v737
    %v780 = vpop.permute.xlu0 %779
    %783 = vset.pattern.permute.xlu0 0
    %784 = vperm.xlu0 %783, %v738
    %v785 = vpop.permute.xlu0 %784
    %788 = vset.pattern.permute.xlu0 0
    %789 = vperm.xlu0 %788, %v739
    %v790 = vpop.permute.xlu0 %789
    %793 = vset.pattern.permute.xlu0 0
    %794 = vperm.xlu0 %793, %v740
    %v795 = vpop.permute.xlu0 %794
    %798 = vset.pattern.permute.xlu0 0
    %799 = vperm.xlu0 %798, %v741
    %v800 = vpop.permute.xlu0 %799
    %803 = vset.pattern.permute.xlu0 0
    %804 = vperm.xlu0 %803, %v742
    %v805 = vpop.permute.xlu0 %804
    %808 = vset.pattern.permute.xlu0 0
    %809 = vperm.xlu0 %808, %v743
    %v810 = vpop.permute.xlu0 %809
    %813 = vset.pattern.permute.xlu0 0
    %814 = vperm.xlu0 %813, %v744
    %v815 = vpop.permute.xlu0 %814
    %818 = vset.pattern.permute.xlu0 0
    %819 = vperm.xlu0 %818, %v745
    %v820 = vpop.permute.xlu0 %819
    %823 = vset.pattern.permute.xlu0 0
    %824 = vperm.xlu0 %823, %v746
    %v825 = vpop.permute.xlu0 %824
    %827 = vmatprep.subr.mxu0 0.0
    %828 = vmatpush1.msra.mxu0 %v714
    %829 = vmatprep.subr.mxu0 0.0
    %830 = vmatpush1.msra.mxu0 %v713
    %831 = vmatprep.subr.mxu0 0.0
    %832 = vmatpush1.msra.mxu0 %v712
    %833 = vmatprep.subr.mxu0 0.0
    %834 = vmatpush1.msra.mxu0 %v711
    %835 = vmatprep.subr.mxu0 0.0
    %836 = vmatpush1.msra.mxu0 %v710
    %837 = vmatprep.subr.mxu0 0.0
    %838 = vmatpush1.msra.mxu0 %v709
    %839 = vmatprep.subr.mxu0 0.0
    %840 = vmatpush1.msra.mxu0 %v708
    %841 = vmatprep.subr.mxu0 0.0
    %842 = vmatpush1.msra.mxu0 %v707
    %843 = vmatprep.subr.mxu0 0.0
    %844 = vmatpush1.msra.mxu0 %v706
    %845 = vmatprep.subr.mxu0 0.0
    %846 = vmatpush1.msra.mxu0 %v705
    %847 = vmatprep.subr.mxu0 0.0
    %848 = vmatpush1.msra.mxu0 %v704
    %849 = vmatprep.subr.mxu0 0.0
    %850 = vmatpush1.msra.mxu0 %v703
    %851 = vmatprep.subr.mxu0 0.0
    %852 = vmatpush1.msra.mxu0 %v702
    %853 = vmatprep.subr.mxu0 0.0
    %854 = vmatpush1.msra.mxu0 %v701
    %855 = vmatprep.subr.mxu0 0.0
    %856 = vmatpush1.msra.mxu0 %v700
    %857 = vmatprep.subr.mxu0 0.0
    %858 = vmatpush1.msra.mxu0 %v699
    %859 = vmatprep.subr.mxu0 0.0
    %860 = vmatpush2.msra.mxu0 0.0
    %861 = vmatprep.subr.mxu0 0.0
    %862 = vmatpush2.msra.mxu0 0.0
    %863 = vmatprep.subr.mxu0 0.0
    %864 = vmatpush2.msra.mxu0 0.0
    %865 = vmatprep.subr.mxu0 0.0
    %866 = vmatpush2.msra.mxu0 0.0
    %867 = vmatprep.subr.mxu0 0.0
    %868 = vmatpush2.msra.mxu0 0.0
    %869 = vmatprep.subr.mxu0 0.0
    %870 = vmatpush2.msra.mxu0 0.0
    %871 = vmatprep.subr.mxu0 0.0
    %872 = vmatpush2.msra.mxu0 0.0
    %873 = vmatprep.subr.mxu0 0.0
    %874 = vmatpush2.msra.mxu0 0.0
    %875 = vmatprep.subr.mxu0 0.0
    %876 = vmatpush2.msra.mxu0 0.0
    %877 = vmatprep.subr.mxu0 0.0
    %878 = vmatpush2.msra.mxu0 0.0
    %879 = vmatprep.subr.mxu0 0.0
    %880 = vmatpush2.msra.mxu0 0.0
    %881 = vmatprep.subr.mxu0 0.0
    %882 = vmatpush2.msra.mxu0 0.0
    %883 = vmatprep.subr.mxu0 0.0
    %884 = vmatpush2.msra.mxu0 0.0
    %885 = vmatprep.subr.mxu0 0.0
    %886 = vmatpush2.msra.mxu0 0.0
    %887 = vmatprep.subr.mxu0 0.0
    %888 = vmatpush2.msra.mxu0 0.0
    %889 = vmatprep.subr.mxu0 0.0
    %890 = vmatpush2.msra.mxu0 0.0
    %891 = vmatprep.mubr.f32.mxu0 0.0
    %892 = vmatmul.mubr.f32.gmra.mxu0 %v715
    %v893 = vpop.f32.mrf.mxu0
    %v894 = vadd.f32 %v750, %v893
    %v895 = vpop.f32.mrf.mxu0
    %896 = vmatprep.mubr.f32.mxu0 0.0
    %897 = vmatmul.mubr.f32.gmra.mxu0 %v716
    %v898 = vpop.f32.mrf.mxu0
    %v899 = vadd.f32 %v755, %v898
    %v900 = vpop.f32.mrf.mxu0
    %901 = vmatprep.mubr.f32.mxu0 0.0
    %902 = vmatmul.mubr.f32.gmra.mxu0 %v717
    %v903 = vpop.f32.mrf.mxu0
    %v904 = vadd.f32 %v760, %v903
    %v905 = vpop.f32.mrf.mxu0
    %906 = vmatprep.mubr.f32.mxu0 0.0
    %907 = vmatmul.mubr.f32.gmra.mxu0 %v718
    %v908 = vpop.f32.mrf.mxu0
    %v909 = vadd.f32 %v765, %v908
    %v910 = vpop.f32.mrf.mxu0
    %911 = vmatprep.mubr.f32.mxu0 0.0
    %912 = vmatmul.mubr.f32.gmra.mxu0 %v719
    %v913 = vpop.f32.mrf.mxu0
    %v914 = vadd.f32 %v770, %v913
    %v915 = vpop.f32.mrf.mxu0
    %916 = vmatprep.mubr.f32.mxu0 0.0
    %917 = vmatmul.mubr.f32.gmra.mxu0 %v720
    %v918 = vpop.f32.mrf.mxu0
    %v919 = vadd.f32 %v775, %v918
    %v920 = vpop.f32.mrf.mxu0
    %921 = vmatprep.mubr.f32.mxu0 0.0
    %922 = vmatmul.mubr.f32.gmra.mxu0 %v721
    %v923 = vpop.f32.mrf.mxu0
    %v924 = vadd.f32 %v780, %v923
    %v925 = vpop.f32.mrf.mxu0
    %926 = vmatprep.mubr.f32.mxu0 0.0
    %927 = vmatmul.mubr.f32.gmra.mxu0 %v722
    %v928 = vpop.f32.mrf.mxu0
    %v929 = vadd.f32 %v785, %v928
    %v930 = vpop.f32.mrf.mxu0
    %931 = vmatprep.mubr.f32.mxu0 0.0
    %932 = vmatmul.mubr.f32.gmra.mxu0 %v723
    %v933 = vpop.f32.mrf.mxu0
    %v934 = vadd.f32 %v790, %v933
    %v935 = vpop.f32.mrf.mxu0
    %936 = vmatprep.mubr.f32.mxu0 0.0
    %937 = vmatmul.mubr.f32.gmra.mxu0 %v724
    %v938 = vpop.f32.mrf.mxu0
    %v939 = vadd.f32 %v795, %v938
    %v940 = vpop.f32.mrf.mxu0
    %941 = vmatprep.mubr.f32.mxu0 0.0
    %942 = vmatmul.mubr.f32.gmra.mxu0 %v725
    %v943 = vpop.f32.mrf.mxu0
    %v944 = vadd.f32 %v800, %v943
    %v945 = vpop.f32.mrf.mxu0
    %946 = vmatprep.mubr.f32.mxu0 0.0
    %947 = vmatmul.mubr.f32.gmra.mxu0 %v726
    %v948 = vpop.f32.mrf.mxu0
    %v949 = vadd.f32 %v805, %v948
    %v950 = vpop.f32.mrf.mxu0
    %951 = vmatprep.mubr.f32.mxu0 0.0
    %952 = vmatmul.mubr.f32.gmra.mxu0 %v727
    %v953 = vpop.f32.mrf.mxu0
    %v954 = vadd.f32 %v810, %v953
    %v955 = vpop.f32.mrf.mxu0
    %956 = vmatprep.mubr.f32.mxu0 0.0
    %957 = vmatmul.mubr.f32.gmra.mxu0 %v728
    %v958 = vpop.f32.mrf.mxu0
    %v959 = vadd.f32 %v815, %v958
    %v960 = vpop.f32.mrf.mxu0
    %961 = vmatprep.mubr.f32.mxu0 0.0
    %962 = vmatmul.mubr.f32.gmra.mxu0 %v729
    %v963 = vpop.f32.mrf.mxu0
    %v964 = vadd.f32 %v820, %v963
    %v965 = vpop.f32.mrf.mxu0
    %966 = vmatprep.mubr.f32.mxu0 0.0
    %967 = vmatmul.mubr.f32.gmra.mxu0 %v730
    %v968 = vpop.f32.mrf.mxu0
    %v969 = vadd.f32 %v825, %v968
    %v970 = vpop.f32.mrf.mxu0
    %971 = vdwg.mxu0
    %vm972 = vcmp.gt.f32.partialorder %v894, 0.0
    %vm973 = vcmp.gt.f32.partialorder %v899, 0.0
    %vm974 = vcmp.gt.f32.partialorder %v904, 0.0
    %vm975 = vcmp.gt.f32.partialorder %v909, 0.0
    %vm976 = vcmp.gt.f32.partialorder %v914, 0.0
    %vm977 = vcmp.gt.f32.partialorder %v919, 0.0
    %vm978 = vcmp.gt.f32.partialorder %v924, 0.0
    %vm979 = vcmp.gt.f32.partialorder %v929, 0.0
    %vm980 = vcmp.gt.f32.partialorder %v934, 0.0
    %vm981 = vcmp.gt.f32.partialorder %v939, 0.0
    %vm982 = vcmp.gt.f32.partialorder %v944, 0.0
    %vm983 = vcmp.gt.f32.partialorder %v949, 0.0
    %vm984 = vcmp.gt.f32.partialorder %v954, 0.0
    %vm985 = vcmp.gt.f32.partialorder %v959, 0.0
    %vm986 = vcmp.gt.f32.partialorder %v964, 0.0
    %vm987 = vcmp.gt.f32.partialorder %v969, 0.0
    %v988 = vmul.f32 %v894, 0.01
    %v989 = vmul.f32 %v899, 0.01
    %v990 = vmul.f32 %v904, 0.01
    %v991 = vmul.f32 %v909, 0.01
    %v992 = vmul.f32 %v914, 0.01
    %v993 = vmul.f32 %v919, 0.01
    %v994 = vmul.f32 %v924, 0.01
    %v995 = vmul.f32 %v929, 0.01
    %v996 = vmul.f32 %v934, 0.01
    %v997 = vmul.f32 %v939, 0.01
    %v998 = vmul.f32 %v944, 0.01
    %v999 = vmul.f32 %v949, 0.01
    %v1000 = vmul.f32 %v954, 0.01
    %v1001 = vmul.f32 %v959, 0.01
    %v1002 = vmul.f32 %v964, 0.01
    %v1003 = vmul.f32 %v969, 0.01
    %v1004 = vsel %vm972, %v894, %v988
    %v1005 = vsel %vm973, %v899, %v989
    %v1006 = vsel %vm974, %v904, %v990
    %v1007 = vsel %vm975, %v909, %v991
    %v1008 = vsel %vm976, %v914, %v992
    %v1009 = vsel %vm977, %v919, %v993
    %v1010 = vsel %vm978, %v924, %v994
    %v1011 = vsel %vm979, %v929, %v995
    %v1012 = vsel %vm980, %v934, %v996
    %v1013 = vsel %vm981, %v939, %v997
    %v1014 = vsel %vm982, %v944, %v998
    %v1015 = vsel %vm983, %v949, %v999
    %v1016 = vsel %vm984, %v954, %v1000
    %v1017 = vsel %vm985, %v959, %v1001
    %v1018 = vsel %vm986, %v964, %v1002
    %v1019 = vsel %vm987, %v969, %v1003
    %v1020 = vld [vmem:[%s7] sm:$0x3]
    %v1021 = vld [vmem:[%s8] sm:$0x3]
    %1023 = vset.pattern.permute.xlu0 0
    %1024 = vperm.xlu0 %1023, %v1021
    %v1025 = vpop.permute.xlu0 %1024
    %1027 = vmatprep.subr.mxu0 0.0
    %1028 = vmatpush1.msra.mxu0 %v1019
    %1029 = vmatprep.subr.mxu0 0.0
    %1030 = vmatpush1.msra.mxu0 %v1018
    %1031 = vmatprep.subr.mxu0 0.0
    %1032 = vmatpush1.msra.mxu0 %v1017
    %1033 = vmatprep.subr.mxu0 0.0
    %1034 = vmatpush1.msra.mxu0 %v1016
    %1035 = vmatprep.subr.mxu0 0.0
    %1036 = vmatpush1.msra.mxu0 %v1015
    %1037 = vmatprep.subr.mxu0 0.0
    %1038 = vmatpush1.msra.mxu0 %v1014
    %1039 = vmatprep.subr.mxu0 0.0
    %1040 = vmatpush1.msra.mxu0 %v1013
    %1041 = vmatprep.subr.mxu0 0.0
    %1042 = vmatpush1.msra.mxu0 %v1012
    %1043 = vmatprep.subr.mxu0 0.0
    %1044 = vmatpush1.msra.mxu0 %v1011
    %1045 = vmatprep.subr.mxu0 0.0
    %1046 = vmatpush1.msra.mxu0 %v1010
    %1047 = vmatprep.subr.mxu0 0.0
    %1048 = vmatpush1.msra.mxu0 %v1009
    %1049 = vmatprep.subr.mxu0 0.0
    %1050 = vmatpush1.msra.mxu0 %v1008
    %1051 = vmatprep.subr.mxu0 0.0
    %1052 = vmatpush1.msra.mxu0 %v1007
    %1053 = vmatprep.subr.mxu0 0.0
    %1054 = vmatpush1.msra.mxu0 %v1006
    %1055 = vmatprep.subr.mxu0 0.0
    %1056 = vmatpush1.msra.mxu0 %v1005
    %1057 = vmatprep.subr.mxu0 0.0
    %1058 = vmatpush1.msra.mxu0 %v1004
    %1059 = vmatprep.subr.mxu0 0.0
    %1060 = vmatpush2.msra.mxu0 0.0
    %1061 = vmatprep.subr.mxu0 0.0
    %1062 = vmatpush2.msra.mxu0 0.0
    %1063 = vmatprep.subr.mxu0 0.0
    %1064 = vmatpush2.msra.mxu0 0.0
    %1065 = vmatprep.subr.mxu0 0.0
    %1066 = vmatpush2.msra.mxu0 0.0
    %1067 = vmatprep.subr.mxu0 0.0
    %1068 = vmatpush2.msra.mxu0 0.0
    %1069 = vmatprep.subr.mxu0 0.0
    %1070 = vmatpush2.msra.mxu0 0.0
    %1071 = vmatprep.subr.mxu0 0.0
    %1072 = vmatpush2.msra.mxu0 0.0
    %1073 = vmatprep.subr.mxu0 0.0
    %1074 = vmatpush2.msra.mxu0 0.0
    %1075 = vmatprep.subr.mxu0 0.0
    %1076 = vmatpush2.msra.mxu0 0.0
    %1077 = vmatprep.subr.mxu0 0.0
    %1078 = vmatpush2.msra.mxu0 0.0
    %1079 = vmatprep.subr.mxu0 0.0
    %1080 = vmatpush2.msra.mxu0 0.0
    %1081 = vmatprep.subr.mxu0 0.0
    %1082 = vmatpush2.msra.mxu0 0.0
    %1083 = vmatprep.subr.mxu0 0.0
    %1084 = vmatpush2.msra.mxu0 0.0
    %1085 = vmatprep.subr.mxu0 0.0
    %1086 = vmatpush2.msra.mxu0 0.0
    %1087 = vmatprep.subr.mxu0 0.0
    %1088 = vmatpush2.msra.mxu0 0.0
    %1089 = vmatprep.subr.mxu0 0.0
    %1090 = vmatpush2.msra.mxu0 0.0
    %1091 = vmatprep.mubr.f32.mxu0 0.0
    %1092 = vmatmul.mubr.f32.gmra.mxu0 %v1020
    %v1093 = vpop.f32.mrf.mxu0
    %v1094 = vadd.f32 %v1025, %v1093
    %v1095 = vpop.f32.mrf.mxu0
    %1096 = vdwg.mxu0
    %1097 = vst [vmem:[#allocation2] sm:$0x3] %v1094
    // Predicated region
    $region38: #{tpu_custom_call.1} parent=1 // pred_check
      _
    $region39: #{tpu_custom_call.1} parent=1 // pred_check_branch
      %1099 = sbr.rel (0) target = $region41
    $region40: #{tpu_custom_call.1} parent=1 // pred_region
      %s1101 = ssub.s32 32, 32
      %1102 = vsyncadd [#allocation3], %s1101
      %s1104 = sshll.u32 [#allocation2], 4
      %s1105 = int_to_ptr.vmem [resolvable:$true] %s1104
      %1107 = dma.vmem_to_hbm [thread:$0]  %s1105, 32, %s9, [#allocation3]
    $region41: #{tpu_custom_call.1} parent=1 // pred_fallthru
      _
    // Predicated region
    $region42: #{tpu_custom_call.1} parent=1 // pred_check
      _
    $region43: #{tpu_custom_call.1} parent=1 // pred_check_branch
      %1109 = sbr.rel (0) target = $region45
    $region44: #{tpu_custom_call.1} parent=1 // pred_region
      %1110 = dma.done [#allocation3], 32
    $region45: #{tpu_custom_call.1} parent=1 // pred_fallthru
      _
    %1111 = vsyncpa [#allocation3], 1

</llo_original>
